<compile_context>
chip_gen: v6e
topology: v6e:2x2x1
jax: 0.10.0
libtpu: 0.0.40
codegen_flags: <defaults>
</compile_context>

<pallas_src>
import jax
import jax.numpy as jnp
from jax.experimental import pallas as pl
from jax.experimental.pallas import tpu as pltpu


# If the full output row fits in a few vregs per sublane row, build it
# in-register and emit one unmasked full-width store.
_FUSED_STORE_MAX_LANES = 1024


def _concat_kernel(left_ref, theta_ref, right_ref, out_ref):
    """Concat along the lane (length) axis for a block of Bt*C sublane rows.

    Block shapes:
      left_ref:  (C, L_left)        -- shared flank, resident across the grid
      theta_ref: (Bt*C, L_theta)    -- Bt batch elements folded into sublanes
      right_ref: (C, L_right)       -- shared flank, resident across the grid
      out_ref:   (Bt*C, L_left + L_theta + L_right)
    """
    c = left_ref.shape[0]
    rows = theta_ref.shape[0]
    reps = rows // c                       # static Python int
    ll = left_ref.shape[-1]
    lt = theta_ref.shape[-1]
    lr = right_ref.shape[-1]
    l_out = out_ref.shape[-1]

    # Sublane-dense flank broadcast: one tiled value per flank (not per-rep).
    left = jnp.tile(left_ref[...], (reps, 1))     # (rows, ll)
    right = jnp.tile(right_ref[...], (reps, 1))   # (rows, lr)

    if l_out <= _FUSED_STORE_MAX_LANES:
        # Single full-width, unmasked, lane-dense store of the whole block.
        out_ref[...] = jnp.concatenate([left, theta_ref[...], right], axis=-1)
    else:
        # Large rows: three stores (dominant theta store + two flank stores),
        # all static offsets, sublane-dense.
        out_ref[:, ll:ll + lt] = theta_ref[...]
        out_ref[:, 0:ll] = left
        out_ref[:, ll + lt:ll + lt + lr] = right


def _pick_batch_tile(B, C, Lt, L_out, itemsize):
    """Largest Bt (divisor of B) such that the output block stays under a
    ~4 MiB cap, with dtype-aware sublane alignment and (when possible) a grid
    of length >= 2 so v7x's two TensorCores both get work."""
    align = max(1, 32 // itemsize)        # 8 rows f32, 16 bf16, 32 int8/fp8
    out_block_cap = 4 << 20               # ~4 MiB output block target

    divisors = [d for d in range(1, B + 1) if B % d == 0]

    def ok(bt, need_grid2, need_align):
        rows = bt * C
        if need_align and (rows % align != 0) and bt != B:   # bt==B: full-array block is always legal
            return False
        if rows * L_out * itemsize > out_block_cap:
            return False
        if need_grid2 and (B // bt) < 2:
            return False
        return True

    # Preference order: aligned + 2-way-splittable > aligned > splittable > anything under cap.
    for need_grid2, need_align in ((True, True), (False, True), (True, False), (False, False)):
        for bt in sorted(divisors, reverse=True):
            if ok(bt, need_grid2, need_align):
                return bt
    return 1


def basic_parameters_forward(theta, left_flank, right_flank):
    """Pallas implementation of BasicParameters.forward(x=None).

    theta:       (B, C, L_theta)
    left_flank:  (1, C, L_left), (B, C, L_left) or (C, L_left)   -- shared across batch
    right_flank: (1, C, L_right), (B, C, L_right) or (C, L_right)
    Returns (B, C, L_left + L_theta + L_right).
    """
    B, C, Lt = theta.shape
    out_dtype = theta.dtype
    itemsize = jnp.dtype(out_dtype).itemsize

    # Flanks are shared across batch (the torch module stores an expanded view
    # whose slices are identical); take the first slice if a batch dim exists.
    left2d = (left_flank[0] if left_flank.ndim == 3 else left_flank).astype(out_dtype)
    right2d = (right_flank[0] if right_flank.ndim == 3 else right_flank).astype(out_dtype)
    assert left2d.shape[0] == C and right2d.shape[0] == C

    Ll = left2d.shape[-1]
    Lr = right2d.shape[-1]
    L_out = Ll + Lt + Lr

    Bt = _pick_batch_tile(B, C, Lt, L_out, itemsize)
    rows = Bt * C
    grid = (B // Bt,)

    # Collapse (B, C) -> sublane rows; row-major, no data movement.
    theta2d = theta.reshape(B * C, Lt)

    grid_spec = pltpu.PrefetchScalarGridSpec(
        num_scalar_prefetch=0,
        grid=grid,
        in_specs=[
            # Constant index_map -> flank blocks stay resident (fetched once).
            pl.BlockSpec((C, Ll), lambda i: (0, 0)),
            pl.BlockSpec((rows, Lt), lambda i: (i, 0)),
            pl.BlockSpec((C, Lr), lambda i: (0, 0)),
        ],
        out_specs=pl.BlockSpec((rows, L_out), lambda i: (i, 0)),
    )

    # VMEM budget: double-buffered theta + out blocks, plus resident flanks.
    block_bytes = (2 * rows * (Lt + L_out) + 2 * C * (Ll + Lr)) * itemsize
    vmem_limit = int(min(max(block_bytes * 3 // 2 + (1 << 20), 32 << 20), 48 << 20))

    # Advisory bytes so XLA can schedule around this bandwidth-bound call.
    bytes_accessed = (B * C * Lt + C * (Ll + Lr) + B * C * L_out) * itemsize
    cost = pl.CostEstimate(flops=0, transcendentals=0, bytes_accessed=bytes_accessed)

    out2d = pl.pallas_call(
        _concat_kernel,
        out_shape=jax.ShapeDtypeStruct((B * C, L_out), out_dtype),
        grid_spec=grid_spec,
        compiler_params=pltpu.CompilerParams(
            dimension_semantics=("parallel",),
            vmem_limit_bytes=vmem_limit,
        ),
        cost_estimate=cost,
    )(left2d, theta2d, right2d)

    return out2d.reshape(B, C, L_out)


def _one_hot_from_logits(key, shape):
    """Sample a one-hot tensor over the channel axis (axis=1) from random logits.

    Mirrors dist.OneHotCategorical(logits=...).sample() over the token dim.
    shape = (B, C, L); returns float32 one-hot along C.
    """
    B, C, L = shape
    logits = jax.random.normal(key, (B, L, C))
    idx = jax.random.categorical(jax.random.fold_in(key, 1), logits, axis=-1)  # (B, L)
    onehot = jax.nn.one_hot(idx, C, dtype=jnp.float32)                         # (B, L, C)
    return jnp.transpose(onehot, (0, 2, 1))                                    # (B, C, L)


if __name__ == "__main__":
    key = jax.random.PRNGKey(0)
    k_theta, k_left, k_right = jax.random.split(key, 3)

    B, C = 2, 4
    L_theta, L_left, L_right = 16, 8, 8

    # theta: nn.Parameter(data) — one-hot categorical sample
    theta = _one_hot_from_logits(k_theta, (B, C, L_theta))
    # flanks: shared one-hot DNA buffers — stored un-broadcast here
    left_flank = _one_hot_from_logits(k_left, (1, C, L_left))
    right_flank = _one_hot_from_logits(k_right, (1, C, L_right))

    out = basic_parameters_forward(theta, left_flank, right_flank)
    out = jax.block_until_ready(out)

    # correctness check against plain-JAX concat reference
    ref = jnp.concatenate(
        [jnp.broadcast_to(left_flank, (B, C, L_left)),
         theta,
         jnp.broadcast_to(right_flank, (B, C, L_right))],
        axis=-1,
    )
    assert out.shape == (B, C, L_left + L_theta + L_right), out.shape
    assert jnp.allclose(out, ref), "mismatch vs reference concat"

    print("KERNEL_OK")
</pallas_src>

<mosaic_0001>
module attributes {stable_mosaic.version = 11 : i64} {
  func.func @_concat_kernel(%arg0: i32, %arg1: memref<4x8xf32, #tpu.memory_space<vmem>>, %arg2: memref<8x16xf32, #tpu.memory_space<vmem>>, %arg3: memref<4x8xf32, #tpu.memory_space<vmem>>, %arg4: memref<8x32xf32, #tpu.memory_space<vmem>>) attributes {dimension_semantics = [#tpu.dimension_semantics<parallel>], iteration_bounds = array<i64: 1>, scalar_prefetch = 0 : i64, scratch_operands = 0 : i64, tpu.core_type = #tpu.core_type<tc>, window_params = [{pipeline_mode = #tpu.pipeline_mode<synchronous>, transform_indices = @transform_0, window_bounds = array<i64: 4, 8>}, {transform_indices = @transform_1, window_bounds = array<i64: 8, 16>}, {pipeline_mode = #tpu.pipeline_mode<synchronous>, transform_indices = @transform_2, window_bounds = array<i64: 4, 8>}, {transform_indices = @transform_3, window_bounds = array<i64: 8, 32>}]} {
    %c0 = arith.constant 0 : index
    %c0_0 = arith.constant 0 : index
    %0 = vector.load %arg1[%c0, %c0_0] : memref<4x8xf32, #tpu.memory_space<vmem>>, vector<4x8xf32>
    %1 = tpu.concatenate %0, %0 in 0 : vector<4x8xf32>, vector<4x8xf32> -> vector<8x8xf32>
    %c0_1 = arith.constant 0 : index
    %c0_2 = arith.constant 0 : index
    %2 = vector.load %arg3[%c0_1, %c0_2] : memref<4x8xf32, #tpu.memory_space<vmem>>, vector<4x8xf32>
    %3 = tpu.concatenate %2, %2 in 0 : vector<4x8xf32>, vector<4x8xf32> -> vector<8x8xf32>
    %c0_3 = arith.constant 0 : index
    %c0_4 = arith.constant 0 : index
    %4 = vector.load %arg2[%c0_3, %c0_4] : memref<8x16xf32, #tpu.memory_space<vmem>>, vector<8x16xf32>
    %5 = tpu.concatenate %1, %4, %3 in 1 : vector<8x8xf32>, vector<8x16xf32>, vector<8x8xf32> -> vector<8x32xf32>
    %c0_5 = arith.constant 0 : index
    %c0_6 = arith.constant 0 : index
    %6 = vector.load %arg4[%c0_5, %c0_6] : memref<8x32xf32, #tpu.memory_space<vmem>>, vector<8x32xf32>
    tpu.vector_store %arg4[%c0_5, %c0_6], %5 {strides = array<i32>} : memref<8x32xf32, #tpu.memory_space<vmem>>, vector<8x32xf32>,
    return
  }
  func.func @transform_0(%arg0: i32) -> (i32, i32) {
    %c0_i32 = arith.constant 0 : i32
    %c0_i32_0 = arith.constant 0 : i32
    %c0_i32_1 = arith.constant 0 : i32
    return %c0_i32, %c0_i32_0 : i32, i32
  }
  func.func @transform_1(%arg0: i32) -> (i32, i32) {
    %c0_i32 = arith.constant 0 : i32
    %c0_i32_0 = arith.constant 0 : i32
    return %arg0, %c0_i32 : i32, i32
  }
  func.func @transform_2(%arg0: i32) -> (i32, i32) {
    %c0_i32 = arith.constant 0 : i32
    %c0_i32_0 = arith.constant 0 : i32
    %c0_i32_1 = arith.constant 0 : i32
    return %c0_i32, %c0_i32_0 : i32, i32
  }
  func.func @transform_3(%arg0: i32) -> (i32, i32) {
    %c0_i32 = arith.constant 0 : i32
    %c0_i32_0 = arith.constant 0 : i32
    return %arg0, %c0_i32 : i32, i32
  }
}

</mosaic_0001>

<llo_original>
// kernel: tpu_custom_call.1
$region0: #{tpu_custom_call.1}
  #allocation0 [shape = 'u32[]', space=smem, size = 0x4, offset = 0x4, fixed_abs, tag = 'smem constant byte address 0x4 - core index']
  #allocation1 [shape = 'u32[144,128]{1,0:T(1,128)}', space=vmem, size = 0x12000, scoped, tag = 'internal scratch']
  %s0 = inlined_call_operand.hbm [shape: f32[4,8], index: 0, kind: input, shape index: {}]
  %s1 = inlined_call_operand.hbm [shape: f32[8,16], index: 1, kind: input, shape index: {}]
  %s2 = inlined_call_operand.hbm [shape: f32[4,8], index: 2, kind: input, shape index: {}]
  %s3 = inlined_call_operand.hbm [shape: f32[8,32], index: 3, kind: output, shape index: {}]
  %s4 = sld [smem:[#allocation0]]
  $region34: #{tpu_custom_call.1} parent=0
    _
  %s6 = ssub.s32 1, %s4
  %s7 = scalar_select 0, %s6, %s4
  $region1: #{tpu_custom_call.1} parent=0
    #allocation2 [shape = 'u8[2048]{0}', space=vmem, size = 0x800, scoped, tag = 'input window, operand 0, single buffered']
    #allocation3 [shape = 's32[1]{0}', space=sflag, size = 0x4, scoped, tag = 'scoped memory for tpu_custom_call.1']
    #allocation4 [shape = 's32[1]{0}', space=sflag, size = 0x4, scoped, tag = 'scoped memory for tpu_custom_call.1']
    #allocation5 [shape = 'u8[4096]{0}', space=vmem, size = 0x1000, scoped, tag = 'input window, operand 1, single buffered']
    #allocation6 [shape = 's32[1]{0}', space=sflag, size = 0x4, scoped, tag = 'scoped memory for tpu_custom_call.1']
    #allocation7 [shape = 'u8[2048]{0}', space=vmem, size = 0x800, scoped, tag = 'input window, operand 2, single buffered']
    #allocation8 [shape = 'u8[4096]{0}', space=vmem, size = 0x1000, scoped, tag = 'output window, operand 0, single buffered']
    %8 = vsyncpa [#allocation3], 0
    %9 = vsyncpa [#allocation6], 0
    %10 = vsyncpa [#allocation4], 0
    // Predicated region
    $region2: #{tpu_custom_call.1} parent=1 // pred_check
      _
    $region3: #{tpu_custom_call.1} parent=1 // pred_check_branch
      %12 = sbr.rel (0) target = $region5
    $region4: #{tpu_custom_call.1} parent=1 // pred_region
      %s14 = ssub.s32 64, 64
      %15 = vsyncadd [#allocation3], %s14
      %s17 = sshll.u32 [#allocation2], 4
      %s18 = int_to_ptr.vmem [resolvable:$true] %s17
      %20 = dma.hbm_to_vmem [thread:$0]  %s0, 64, %s18, [#allocation3]
    $region5: #{tpu_custom_call.1} parent=1 // pred_fallthru
      _
    // Predicated region
    $region6: #{tpu_custom_call.1} parent=1 // pred_check
      _
    $region7: #{tpu_custom_call.1} parent=1 // pred_check_branch
      %22 = sbr.rel (0) target = $region9
    $region8: #{tpu_custom_call.1} parent=1 // pred_region
      %s24 = ssub.s32 128, 128
      %25 = vsyncadd [#allocation6], %s24
      %s27 = sshll.u32 [#allocation5], 4
      %s28 = int_to_ptr.vmem [resolvable:$true] %s27
      %30 = dma.hbm_to_vmem [thread:$0]  %s1, 128, %s28, [#allocation6]
    $region9: #{tpu_custom_call.1} parent=1 // pred_fallthru
      _
    // Predicated region
    $region10: #{tpu_custom_call.1} parent=1 // pred_check
      _
    $region11: #{tpu_custom_call.1} parent=1 // pred_check_branch
      %32 = sbr.rel (0) target = $region13
    $region12: #{tpu_custom_call.1} parent=1 // pred_region
      %s34 = ssub.s32 64, 64
      %35 = vsyncadd [#allocation6], %s34
      %s37 = sshll.u32 [#allocation7], 4
      %s38 = int_to_ptr.vmem [resolvable:$true] %s37
      %40 = dma.hbm_to_vmem [thread:$0]  %s2, 64, %s38, [#allocation6]
    $region13: #{tpu_custom_call.1} parent=1 // pred_fallthru
      _
    // Predicated region
    $region14: #{tpu_custom_call.1} parent=1 // pred_check
      _
    $region15: #{tpu_custom_call.1} parent=1 // pred_check_branch
      %42 = sbr.rel (0) target = $region17
    $region16: #{tpu_custom_call.1} parent=1 // pred_region
      %43 = dma.done [#allocation3], 64
    $region17: #{tpu_custom_call.1} parent=1 // pred_fallthru
      _
    // Predicated region
    $region18: #{tpu_custom_call.1} parent=1 // pred_check
      _
    $region19: #{tpu_custom_call.1} parent=1 // pred_check_branch
      %45 = sbr.rel (0) target = $region21
    $region20: #{tpu_custom_call.1} parent=1 // pred_region
      %46 = dma.done [#allocation6], 128
    $region21: #{tpu_custom_call.1} parent=1 // pred_fallthru
      _
    // Predicated region
    $region22: #{tpu_custom_call.1} parent=1 // pred_check
      _
    $region23: #{tpu_custom_call.1} parent=1 // pred_check_branch
      %48 = sbr.rel (0) target = $region25
    $region24: #{tpu_custom_call.1} parent=1 // pred_region
      %49 = dma.done [#allocation6], 64
    $region25: #{tpu_custom_call.1} parent=1 // pred_fallthru
      _
    %v50 = vld [vmem:[#allocation2] sm:$0xf]
    %v52 = vrot.slane %v50, 4
    %vm54 = vcmask 1043456
    %v55 = vsel %vm54, %v50, %v52
    %v56 = vld [vmem:[#allocation7] sm:$0xf]
    %v58 = vrot.slane %v56, 4
    %v60 = vsel %vm54, %v56, %v58
    %v61 = vld [vmem:[#allocation5] sm:$0xff]
    %63 = vrot.lane.b32.xlu0 %v61, 8
    %v64 = vpop.permute.xlu0 %63
    %67 = vrot.lane.b32.xlu0 %v60, 24
    %v68 = vpop.permute.xlu0 %67
    %vm70 = vcmask 64512
    %v71 = vsel %vm70, %v55, %v64
    %vm72 = vcmask 195584
    %v73 = vsel %vm72, %v71, %v68
    %vm74 = vcmask 261120
    %75 = vst.msk [vmem:[#allocation8] sm:$0xff] %vm74, %v73
    // Predicated region
    $region26: #{tpu_custom_call.1} parent=1 // pred_check
      _
    $region27: #{tpu_custom_call.1} parent=1 // pred_check_branch
      %77 = sbr.rel (0) target = $region29
    $region28: #{tpu_custom_call.1} parent=1 // pred_region
      %s79 = ssub.s32 128, 128
      %80 = vsyncadd [#allocation4], %s79
      %s82 = sshll.u32 [#allocation8], 4
      %s83 = int_to_ptr.vmem [resolvable:$true] %s82
      %85 = dma.vmem_to_hbm [thread:$0]  %s83, 128, %s3, [#allocation4]
    $region29: #{tpu_custom_call.1} parent=1 // pred_fallthru
      _
    // Predicated region
    $region30: #{tpu_custom_call.1} parent=1 // pred_check
      _
    $region31: #{tpu_custom_call.1} parent=1 // pred_check_branch
      %87 = sbr.rel (0) target = $region33
    $region32: #{tpu_custom_call.1} parent=1 // pred_region
      %88 = dma.done [#allocation4], 128
    $region33: #{tpu_custom_call.1} parent=1 // pred_fallthru
      _
    %89 = vsyncpa [#allocation3], 1
    %90 = vsyncpa [#allocation6], 1
    %91 = vsyncpa [#allocation4], 1

</llo_original>
